<compile_context>
chip_gen: v5e
topology: v5e:2x2
jax: 0.10.0
libtpu: 0.0.40
codegen_flags: <defaults>
</compile_context>

<pallas_src>
import jax
import jax.numpy as jnp
from jax import lax
from jax.experimental import pallas as pl
from jax.experimental.pallas import tpu as pltpu


def _char_decoder_kernel(ids_ref, emb_ref, wih_ref, whh_ref, b_ref,
                         wout_ref, bout_ref, h0_ref, c0_ref,
                         scores_ref, lasth_ref, lastc_ref,
                         xproj_scr, h_hist_scr):
    Bp, H = h0_ref.shape
    LBp = ids_ref.shape[0]          # L * Bp (static)
    Vp = emb_ref.shape[0]           # padded vocab (multiple of 128)
    L = LBp // Bp

    # --- Embedding lookup as a one-hot MXU matmul (no gather op needed). ---
    # ids_ref is (L*Bp, 1) int32; out-of-range / pad ids yield zero rows,
    # matching padding_idx semantics (pad embedding row is zero anyway).
    onehot = (lax.broadcasted_iota(jnp.int32, (LBp, Vp), 1)
              == ids_ref[...]).astype(jnp.float32)
    x = jnp.dot(onehot, emb_ref[...], preferred_element_type=jnp.float32)

    # --- Non-recurrent part of the gates, hoisted out of the time loop. ---
    xproj_scr[...] = (
        jnp.dot(x, wih_ref[...], preferred_element_type=jnp.float32)
        + b_ref[...])

    whh = whh_ref[...]              # (H, 4H) hoisted out of the loop

    def step(t, carry):
        h_prev, c_prev = carry
        row0 = pl.multiple_of(t * Bp, 8)
        gates = (xproj_scr[pl.ds(row0, Bp), :]
                 + jnp.dot(h_prev, whh, preferred_element_type=jnp.float32))
        # With H a multiple of 128 these slices are lane-aligned; at the
        # demo's H=32 they are sub-lane views (correct, tiny).
        i_g = jax.nn.sigmoid(gates[:, 0 * H:1 * H])
        f_g = jax.nn.sigmoid(gates[:, 1 * H:2 * H])
        g_g = jnp.tanh(gates[:, 2 * H:3 * H])
        o_g = jax.nn.sigmoid(gates[:, 3 * H:4 * H])
        c_new = f_g * c_prev + i_g * g_g
        h_new = o_g * jnp.tanh(c_new)
        h_hist_scr[pl.ds(row0, Bp), :] = h_new
        return h_new, c_new

    h_last, c_last = lax.fori_loop(
        0, L, step, (h0_ref[...], c0_ref[...]), unroll=True)

    lasth_ref[...] = h_last
    lastc_ref[...] = c_last

    # --- Batched output projection: one MXU matmul, one lane-dense store. ---
    scores_ref[...] = (
        jnp.dot(h_hist_scr[...], wout_ref[...],
                preferred_element_type=jnp.float32)
        + bout_ref[...])


def _round_up(x, m):
    return ((x + m - 1) // m) * m


@jax.jit
def char_decoder_forward(input_ids, params, dec_hidden=None):
    """Mirrors CharDecoder.forward.

    input_ids: int32 (L, B)
    params: emb (V, E), w_ih_t (E, 4H), w_hh_t (H, 4H), b (1, 4H),
            w_out_t (H, V), b_out (1, V)
    dec_hidden: optional ((1, B, H), (1, B, H))
    returns: scores (L, B, V), (last_hidden (1, B, H), last_cell (1, B, H))
    """
    emb = params["emb"]
    w_ih_t = params["w_ih_t"]
    w_hh_t = params["w_hh_t"]
    b = params["b"]
    w_out_t = params["w_out_t"]
    b_out = params["b_out"]

    L, B = input_ids.shape
    V, E = emb.shape
    H = w_hh_t.shape[0]

    Bp = _round_up(B, 8)        # sublane multiple
    Vp = _round_up(V, 128)      # lane multiple -> lane-dense stores / one-hot

    # Pad ids along batch; reshape to a (L*Bp, 1) int32 column for the kernel.
    ids = input_ids.astype(jnp.int32)
    if Bp != B:
        ids = jnp.pad(ids, ((0, 0), (0, Bp - B)))
    ids2d = ids.reshape(L * Bp, 1)

    emb_p = jnp.pad(emb.astype(jnp.float32), ((0, Vp - V), (0, 0)))
    w_out_p = jnp.pad(w_out_t, ((0, 0), (0, Vp - V)))
    b_out_p = jnp.pad(b_out, ((0, 0), (0, Vp - V)))

    if dec_hidden is None:
        h0 = jnp.zeros((Bp, H), jnp.float32)
        c0 = jnp.zeros((Bp, H), jnp.float32)
    else:
        h0 = dec_hidden[0][0].astype(jnp.float32)
        c0 = dec_hidden[1][0].astype(jnp.float32)
        if Bp != B:
            h0 = jnp.pad(h0, ((0, Bp - B), (0, 0)))
            c0 = jnp.pad(c0, ((0, Bp - B), (0, 0)))

    vmem = pl.BlockSpec(memory_space=pltpu.MemorySpace.VMEM)

    scores_p, last_h_p, last_c_p = pl.pallas_call(
        _char_decoder_kernel,
        out_shape=(
            jax.ShapeDtypeStruct((L * Bp, Vp), jnp.float32),   # scores (padded)
            jax.ShapeDtypeStruct((Bp, H), jnp.float32),        # last hidden
            jax.ShapeDtypeStruct((Bp, H), jnp.float32),        # last cell
        ),
        in_specs=[vmem] * 9,
        out_specs=(vmem, vmem, vmem),
        scratch_shapes=[
            pltpu.VMEM((L * Bp, 4 * H), jnp.float32),   # x-proj (+bias) staging
            pltpu.VMEM((L * Bp, H), jnp.float32),       # h_t history
        ],
    )(ids2d, emb_p, w_ih_t, w_hh_t, b, w_out_p, b_out_p, h0, c0)

    scores = scores_p.reshape(L, Bp, Vp)[:, :B, :V]
    last_h = last_h_p[:B][None]
    last_c = last_c_p[:B][None]
    return scores, (last_h, last_c)


def _reference_forward(input_ids, params, dec_hidden=None):
    """Pure-JAX reference (same math as torch.nn.LSTM + Linear)."""
    emb = params["emb"]
    x = emb[input_ids]
    L, B, _ = x.shape
    H = params["w_hh_t"].shape[0]
    if dec_hidden is None:
        h = jnp.zeros((B, H), jnp.float32)
        c = jnp.zeros((B, H), jnp.float32)
    else:
        h, c = dec_hidden[0][0], dec_hidden[1][0]

    def step(carry, x_t):
        h, c = carry
        g = x_t @ params["w_ih_t"] + h @ params["w_hh_t"] + params["b"]
        i = jax.nn.sigmoid(g[:, 0 * H:1 * H])
        f = jax.nn.sigmoid(g[:, 1 * H:2 * H])
        gg = jnp.tanh(g[:, 2 * H:3 * H])
        o = jax.nn.sigmoid(g[:, 3 * H:4 * H])
        c = f * c + i * gg
        h = o * jnp.tanh(c)
        return (h, c), h

    (h, c), hs = lax.scan(step, (h, c), x)
    scores = hs @ params["w_out_t"] + params["b_out"]
    return scores, (h[None], c[None])


def init_params(key, vocab_size, char_embedding_size, hidden_size, pad_idx):
    ks = jax.random.split(key, 7)
    E, H, V = char_embedding_size, hidden_size, vocab_size
    emb = jax.random.normal(ks[0], (V, E), jnp.float32) * 0.1
    emb = emb.at[pad_idx].set(0.0)                      # padding_idx row
    w_ih = jax.random.normal(ks[1], (4 * H, E), jnp.float32) * 0.1
    w_hh = jax.random.normal(ks[2], (4 * H, H), jnp.float32) * 0.1
    b_ih = jax.random.normal(ks[3], (4 * H,), jnp.float32) * 0.1
    b_hh = jax.random.normal(ks[4], (4 * H,), jnp.float32) * 0.1
    w_out = jax.random.normal(ks[5], (V, H), jnp.float32) * 0.1
    b_out = jax.random.normal(ks[6], (V,), jnp.float32) * 0.1
    return {
        "emb": emb,
        "w_ih_t": w_ih.T,                               # (E, 4H)
        "w_hh_t": w_hh.T,                               # (H, 4H)
        "b": (b_ih + b_hh)[None, :],                    # (1, 4H)
        "w_out_t": w_out.T,                             # (H, V)
        "b_out": b_out[None, :],                        # (1, V)
    }


if __name__ == "__main__":
    # Small, module-consistent shapes.
    L, B = 8, 4                  # (length, batch_size)
    E, H, V = 32, 32, 48         # char_embedding_size, hidden_size, vocab
    PAD = 0

    key = jax.random.PRNGKey(0)
    k_ids, k_par, k_h, k_c = jax.random.split(key, 4)

    params = init_params(k_par, V, E, H, PAD)
    input_ids = jax.random.randint(k_ids, (L, B), 0, V, dtype=jnp.int32)
    dec_hidden = (
        jax.random.normal(k_h, (1, B, H), jnp.float32) * 0.1,
        jax.random.normal(k_c, (1, B, H), jnp.float32) * 0.1,
    )

    # Path 1: with provided initial decoder state.
    scores, (last_h, last_c) = char_decoder_forward(input_ids, params, dec_hidden)
    jax.block_until_ready((scores, last_h, last_c))

    ref_scores, (ref_h, ref_c) = _reference_forward(input_ids, params, dec_hidden)
    assert scores.shape == (L, B, V)
    assert last_h.shape == (1, B, H) and last_c.shape == (1, B, H)
    assert jnp.allclose(scores, ref_scores, atol=1e-4, rtol=1e-4)
    assert jnp.allclose(last_h, ref_h, atol=1e-4, rtol=1e-4)
    assert jnp.allclose(last_c, ref_c, atol=1e-4, rtol=1e-4)

    # Path 2: zero initial state (dec_hidden=None branch of the module).
    scores0, (h0_out, c0_out) = char_decoder_forward(input_ids, params, None)
    jax.block_until_ready((scores0, h0_out, c0_out))
    ref_scores0, (ref_h0, ref_c0) = _reference_forward(input_ids, params, None)
    assert jnp.allclose(scores0, ref_scores0, atol=1e-4, rtol=1e-4)
    assert jnp.allclose(h0_out, ref_h0, atol=1e-4, rtol=1e-4)
    assert jnp.allclose(c0_out, ref_c0, atol=1e-4, rtol=1e-4)

    print("KERNEL_OK")
</pallas_src>

<mosaic_0001>
module attributes {stable_mosaic.version = 11 : i64} {
  func.func @_char_decoder_kernel(%arg0: memref<64x1xi32, #tpu.memory_space<vmem>>, %arg1: memref<128x32xf32, #tpu.memory_space<vmem>>, %arg2: memref<32x128xf32, #tpu.memory_space<vmem>>, %arg3: memref<32x128xf32, #tpu.memory_space<vmem>>, %arg4: memref<1x128xf32, #tpu.memory_space<vmem>>, %arg5: memref<32x128xf32, #tpu.memory_space<vmem>>, %arg6: memref<1x128xf32, #tpu.memory_space<vmem>>, %arg7: memref<8x32xf32, #tpu.memory_space<vmem>>, %arg8: memref<8x32xf32, #tpu.memory_space<vmem>>, %arg9: memref<64x128xf32, #tpu.memory_space<vmem>>, %arg10: memref<8x32xf32, #tpu.memory_space<vmem>>, %arg11: memref<8x32xf32, #tpu.memory_space<vmem>>, %arg12: memref<64x128xf32, #tpu.memory_space<vmem>>, %arg13: memref<64x32xf32, #tpu.memory_space<vmem>>) attributes {dimension_semantics = [], scalar_prefetch = 0 : i64, scratch_operands = 2 : i64, tpu.core_type = #tpu.core_type<tc>} {
    %0 = tpu.iota {dimensions = array<i32: 1>} : vector<64x128xi32>
    %c0 = arith.constant 0 : index
    %c0_0 = arith.constant 0 : index
    %1 = vector.load %arg0[%c0, %c0_0] : memref<64x1xi32, #tpu.memory_space<vmem>>, vector<64x1xi32>
    %2 = vector.broadcast %1 : vector<64x1xi32> to vector<64x128xi32>
    %3 = arith.cmpi eq, %0, %2 : vector<64x128xi32>
    %4 = arith.extui %3 : vector<64x128xi1> to vector<64x128xi32>
    %5 = arith.sitofp %4 : vector<64x128xi32> to vector<64x128xf32>
    %c0_1 = arith.constant 0 : index
    %c0_2 = arith.constant 0 : index
    %6 = vector.load %arg1[%c0_1, %c0_2] : memref<128x32xf32, #tpu.memory_space<vmem>>, vector<128x32xf32>
    %cst = arith.constant dense<0.000000e+00> : vector<64x32xf32>
    %7 = tpu.matmul %5, %6, %cst {dimension_numbers = #tpu.dot_dimension_numbers<[1], [0], [0], [1], [0, 0, 1, 1], [], []>} : vector<64x128xf32>, vector<128x32xf32>, vector<64x32xf32> -> vector<64x32xf32>
    %c0_3 = arith.constant 0 : index
    %c0_4 = arith.constant 0 : index
    %8 = vector.load %arg2[%c0_3, %c0_4] : memref<32x128xf32, #tpu.memory_space<vmem>>, vector<32x128xf32>
    %cst_5 = arith.constant dense<0.000000e+00> : vector<64x128xf32>
    %9 = tpu.matmul %7, %8, %cst_5 {dimension_numbers = #tpu.dot_dimension_numbers<[1], [0], [0], [1], [0, 0, 1, 1], [], []>} : vector<64x32xf32>, vector<32x128xf32>, vector<64x128xf32> -> vector<64x128xf32>
    %c0_6 = arith.constant 0 : index
    %c0_7 = arith.constant 0 : index
    %10 = vector.load %arg4[%c0_6, %c0_7] : memref<1x128xf32, #tpu.memory_space<vmem>>, vector<1x128xf32>
    %11 = vector.broadcast %10 : vector<1x128xf32> to vector<64x128xf32>
    %12 = arith.addf %9, %11 : vector<64x128xf32>
    %c0_8 = arith.constant 0 : index
    %c0_9 = arith.constant 0 : index
    %13 = vector.load %arg12[%c0_8, %c0_9] : memref<64x128xf32, #tpu.memory_space<vmem>>, vector<64x128xf32>
    tpu.vector_store %arg12[%c0_8, %c0_9], %12 {strides = array<i32>} : memref<64x128xf32, #tpu.memory_space<vmem>>, vector<64x128xf32>,
    %c0_10 = arith.constant 0 : index
    %c0_11 = arith.constant 0 : index
    %14 = vector.load %arg3[%c0_10, %c0_11] : memref<32x128xf32, #tpu.memory_space<vmem>>, vector<32x128xf32>
    %c0_12 = arith.constant 0 : index
    %c0_13 = arith.constant 0 : index
    %15 = vector.load %arg7[%c0_12, %c0_13] : memref<8x32xf32, #tpu.memory_space<vmem>>, vector<8x32xf32>
    %c0_14 = arith.constant 0 : index
    %c0_15 = arith.constant 0 : index
    %16 = vector.load %arg8[%c0_14, %c0_15] : memref<8x32xf32, #tpu.memory_space<vmem>>, vector<8x32xf32>
    %c0_i32 = arith.constant 0 : i32
    %c8_i32 = arith.constant 8 : i32
    %17 = arith.muli %c0_i32, %c8_i32 : i32
    %18 = tpu.assume_multiple %17, 8 : i32
    %19 = arith.index_cast %18 : i32 to index
    %c0_16 = arith.constant 0 : index
    %20 = vector.load %arg12[%19, %c0_16] : memref<64x128xf32, #tpu.memory_space<vmem>>, vector<8x128xf32>
    %cst_17 = arith.constant dense<0.000000e+00> : vector<8x128xf32>
    %21 = tpu.matmul %15, %14, %cst_17 {dimension_numbers = #tpu.dot_dimension_numbers<[1], [0], [0], [1], [0, 0, 1, 1], [], []>} : vector<8x32xf32>, vector<32x128xf32>, vector<8x128xf32> -> vector<8x128xf32>
    %22 = arith.addf %20, %21 : vector<8x128xf32>
    %23 = vector.extract_strided_slice %22 {offsets = [0, 0], sizes = [8, 32], strides = [1, 1]} : vector<8x128xf32> to vector<8x32xf32>
    %24 = arith.negf %23 : vector<8x32xf32>
    %25 = math.exp %24 : vector<8x32xf32>
    %cst_18 = arith.constant 1.000000e+00 : f32
    %26 = vector.broadcast %cst_18 : f32 to vector<8x32xf32>
    %27 = arith.addf %26, %25 : vector<8x32xf32>
    %28 = arith.divf %26, %27 : vector<8x32xf32>
    %29 = vector.extract_strided_slice %22 {offsets = [0, 32], sizes = [8, 32], strides = [1, 1]} : vector<8x128xf32> to vector<8x32xf32>
    %30 = arith.negf %29 : vector<8x32xf32>
    %31 = math.exp %30 : vector<8x32xf32>
    %cst_19 = arith.constant 1.000000e+00 : f32
    %32 = vector.broadcast %cst_19 : f32 to vector<8x32xf32>
    %33 = arith.addf %32, %31 : vector<8x32xf32>
    %34 = arith.divf %32, %33 : vector<8x32xf32>
    %35 = vector.extract_strided_slice %22 {offsets = [0, 64], sizes = [8, 32], strides = [1, 1]} : vector<8x128xf32> to vector<8x32xf32>
    %36 = math.tanh %35 : vector<8x32xf32>
    %37 = vector.extract_strided_slice %22 {offsets = [0, 96], sizes = [8, 32], strides = [1, 1]} : vector<8x128xf32> to vector<8x32xf32>
    %38 = arith.negf %37 : vector<8x32xf32>
    %39 = math.exp %38 : vector<8x32xf32>
    %cst_20 = arith.constant 1.000000e+00 : f32
    %40 = vector.broadcast %cst_20 : f32 to vector<8x32xf32>
    %41 = arith.addf %40, %39 : vector<8x32xf32>
    %42 = arith.divf %40, %41 : vector<8x32xf32>
    %43 = arith.mulf %34, %16 : vector<8x32xf32>
    %44 = arith.mulf %28, %36 : vector<8x32xf32>
    %45 = arith.addf %43, %44 : vector<8x32xf32>
    %46 = math.tanh %45 : vector<8x32xf32>
    %47 = arith.mulf %42, %46 : vector<8x32xf32>
    %48 = arith.index_cast %18 : i32 to index
    %c0_21 = arith.constant 0 : index
    %49 = vector.load %arg13[%48, %c0_21] : memref<64x32xf32, #tpu.memory_space<vmem>>, vector<8x32xf32>
    tpu.vector_store %arg13[%48, %c0_21], %47 {strides = array<i32>} : memref<64x32xf32, #tpu.memory_space<vmem>>, vector<8x32xf32>,
    %c1_i32 = arith.constant 1 : i32
    %c8_i32_22 = arith.constant 8 : i32
    %50 = arith.muli %c1_i32, %c8_i32_22 : i32
    %51 = tpu.assume_multiple %50, 8 : i32
    %52 = arith.index_cast %51 : i32 to index
    %c0_23 = arith.constant 0 : index
    %53 = vector.load %arg12[%52, %c0_23] : memref<64x128xf32, #tpu.memory_space<vmem>>, vector<8x128xf32>
    %cst_24 = arith.constant dense<0.000000e+00> : vector<8x128xf32>
    %54 = tpu.matmul %47, %14, %cst_24 {dimension_numbers = #tpu.dot_dimension_numbers<[1], [0], [0], [1], [0, 0, 1, 1], [], []>} : vector<8x32xf32>, vector<32x128xf32>, vector<8x128xf32> -> vector<8x128xf32>
    %55 = arith.addf %53, %54 : vector<8x128xf32>
    %56 = vector.extract_strided_slice %55 {offsets = [0, 0], sizes = [8, 32], strides = [1, 1]} : vector<8x128xf32> to vector<8x32xf32>
    %57 = arith.negf %56 : vector<8x32xf32>
    %58 = math.exp %57 : vector<8x32xf32>
    %cst_25 = arith.constant 1.000000e+00 : f32
    %59 = vector.broadcast %cst_25 : f32 to vector<8x32xf32>
    %60 = arith.addf %59, %58 : vector<8x32xf32>
    %61 = arith.divf %59, %60 : vector<8x32xf32>
    %62 = vector.extract_strided_slice %55 {offsets = [0, 32], sizes = [8, 32], strides = [1, 1]} : vector<8x128xf32> to vector<8x32xf32>
    %63 = arith.negf %62 : vector<8x32xf32>
    %64 = math.exp %63 : vector<8x32xf32>
    %cst_26 = arith.constant 1.000000e+00 : f32
    %65 = vector.broadcast %cst_26 : f32 to vector<8x32xf32>
    %66 = arith.addf %65, %64 : vector<8x32xf32>
    %67 = arith.divf %65, %66 : vector<8x32xf32>
    %68 = vector.extract_strided_slice %55 {offsets = [0, 64], sizes = [8, 32], strides = [1, 1]} : vector<8x128xf32> to vector<8x32xf32>
    %69 = math.tanh %68 : vector<8x32xf32>
    %70 = vector.extract_strided_slice %55 {offsets = [0, 96], sizes = [8, 32], strides = [1, 1]} : vector<8x128xf32> to vector<8x32xf32>
    %71 = arith.negf %70 : vector<8x32xf32>
    %72 = math.exp %71 : vector<8x32xf32>
    %cst_27 = arith.constant 1.000000e+00 : f32
    %73 = vector.broadcast %cst_27 : f32 to vector<8x32xf32>
    %74 = arith.addf %73, %72 : vector<8x32xf32>
    %75 = arith.divf %73, %74 : vector<8x32xf32>
    %76 = arith.mulf %67, %45 : vector<8x32xf32>
    %77 = arith.mulf %61, %69 : vector<8x32xf32>
    %78 = arith.addf %76, %77 : vector<8x32xf32>
    %79 = math.tanh %78 : vector<8x32xf32>
    %80 = arith.mulf %75, %79 : vector<8x32xf32>
    %81 = arith.index_cast %51 : i32 to index
    %c0_28 = arith.constant 0 : index
    %82 = vector.load %arg13[%81, %c0_28] : memref<64x32xf32, #tpu.memory_space<vmem>>, vector<8x32xf32>
    tpu.vector_store %arg13[%81, %c0_28], %80 {strides = array<i32>} : memref<64x32xf32, #tpu.memory_space<vmem>>, vector<8x32xf32>,
    %c2_i32 = arith.constant 2 : i32
    %c8_i32_29 = arith.constant 8 : i32
    %83 = arith.muli %c2_i32, %c8_i32_29 : i32
    %84 = tpu.assume_multiple %83, 8 : i32
    %85 = arith.index_cast %84 : i32 to index
    %c0_30 = arith.constant 0 : index
    %86 = vector.load %arg12[%85, %c0_30] : memref<64x128xf32, #tpu.memory_space<vmem>>, vector<8x128xf32>
    %cst_31 = arith.constant dense<0.000000e+00> : vector<8x128xf32>
    %87 = tpu.matmul %80, %14, %cst_31 {dimension_numbers = #tpu.dot_dimension_numbers<[1], [0], [0], [1], [0, 0, 1, 1], [], []>} : vector<8x32xf32>, vector<32x128xf32>, vector<8x128xf32> -> vector<8x128xf32>
    %88 = arith.addf %86, %87 : vector<8x128xf32>
    %89 = vector.extract_strided_slice %88 {offsets = [0, 0], sizes = [8, 32], strides = [1, 1]} : vector<8x128xf32> to vector<8x32xf32>
    %90 = arith.negf %89 : vector<8x32xf32>
    %91 = math.exp %90 : vector<8x32xf32>
    %cst_32 = arith.constant 1.000000e+00 : f32
    %92 = vector.broadcast %cst_32 : f32 to vector<8x32xf32>
    %93 = arith.addf %92, %91 : vector<8x32xf32>
    %94 = arith.divf %92, %93 : vector<8x32xf32>
    %95 = vector.extract_strided_slice %88 {offsets = [0, 32], sizes = [8, 32], strides = [1, 1]} : vector<8x128xf32> to vector<8x32xf32>
    %96 = arith.negf %95 : vector<8x32xf32>
    %97 = math.exp %96 : vector<8x32xf32>
    %cst_33 = arith.constant 1.000000e+00 : f32
    %98 = vector.broadcast %cst_33 : f32 to vector<8x32xf32>
    %99 = arith.addf %98, %97 : vector<8x32xf32>
    %100 = arith.divf %98, %99 : vector<8x32xf32>
    %101 = vector.extract_strided_slice %88 {offsets = [0, 64], sizes = [8, 32], strides = [1, 1]} : vector<8x128xf32> to vector<8x32xf32>
    %102 = math.tanh %101 : vector<8x32xf32>
    %103 = vector.extract_strided_slice %88 {offsets = [0, 96], sizes = [8, 32], strides = [1, 1]} : vector<8x128xf32> to vector<8x32xf32>
    %104 = arith.negf %103 : vector<8x32xf32>
    %105 = math.exp %104 : vector<8x32xf32>
    %cst_34 = arith.constant 1.000000e+00 : f32
    %106 = vector.broadcast %cst_34 : f32 to vector<8x32xf32>
    %107 = arith.addf %106, %105 : vector<8x32xf32>
    %108 = arith.divf %106, %107 : vector<8x32xf32>
    %109 = arith.mulf %100, %78 : vector<8x32xf32>
    %110 = arith.mulf %94, %102 : vector<8x32xf32>
    %111 = arith.addf %109, %110 : vector<8x32xf32>
    %112 = math.tanh %111 : vector<8x32xf32>
    %113 = arith.mulf %108, %112 : vector<8x32xf32>
    %114 = arith.index_cast %84 : i32 to index
    %c0_35 = arith.constant 0 : index
    %115 = vector.load %arg13[%114, %c0_35] : memref<64x32xf32, #tpu.memory_space<vmem>>, vector<8x32xf32>
    tpu.vector_store %arg13[%114, %c0_35], %113 {strides = array<i32>} : memref<64x32xf32, #tpu.memory_space<vmem>>, vector<8x32xf32>,
    %c3_i32 = arith.constant 3 : i32
    %c8_i32_36 = arith.constant 8 : i32
    %116 = arith.muli %c3_i32, %c8_i32_36 : i32
    %117 = tpu.assume_multiple %116, 8 : i32
    %118 = arith.index_cast %117 : i32 to index
    %c0_37 = arith.constant 0 : index
    %119 = vector.load %arg12[%118, %c0_37] : memref<64x128xf32, #tpu.memory_space<vmem>>, vector<8x128xf32>
    %cst_38 = arith.constant dense<0.000000e+00> : vector<8x128xf32>
    %120 = tpu.matmul %113, %14, %cst_38 {dimension_numbers = #tpu.dot_dimension_numbers<[1], [0], [0], [1], [0, 0, 1, 1], [], []>} : vector<8x32xf32>, vector<32x128xf32>, vector<8x128xf32> -> vector<8x128xf32>
    %121 = arith.addf %119, %120 : vector<8x128xf32>
    %122 = vector.extract_strided_slice %121 {offsets = [0, 0], sizes = [8, 32], strides = [1, 1]} : vector<8x128xf32> to vector<8x32xf32>
    %123 = arith.negf %122 : vector<8x32xf32>
    %124 = math.exp %123 : vector<8x32xf32>
    %cst_39 = arith.constant 1.000000e+00 : f32
    %125 = vector.broadcast %cst_39 : f32 to vector<8x32xf32>
    %126 = arith.addf %125, %124 : vector<8x32xf32>
    %127 = arith.divf %125, %126 : vector<8x32xf32>
    %128 = vector.extract_strided_slice %121 {offsets = [0, 32], sizes = [8, 32], strides = [1, 1]} : vector<8x128xf32> to vector<8x32xf32>
    %129 = arith.negf %128 : vector<8x32xf32>
    %130 = math.exp %129 : vector<8x32xf32>
    %cst_40 = arith.constant 1.000000e+00 : f32
    %131 = vector.broadcast %cst_40 : f32 to vector<8x32xf32>
    %132 = arith.addf %131, %130 : vector<8x32xf32>
    %133 = arith.divf %131, %132 : vector<8x32xf32>
    %134 = vector.extract_strided_slice %121 {offsets = [0, 64], sizes = [8, 32], strides = [1, 1]} : vector<8x128xf32> to vector<8x32xf32>
    %135 = math.tanh %134 : vector<8x32xf32>
    %136 = vector.extract_strided_slice %121 {offsets = [0, 96], sizes = [8, 32], strides = [1, 1]} : vector<8x128xf32> to vector<8x32xf32>
    %137 = arith.negf %136 : vector<8x32xf32>
    %138 = math.exp %137 : vector<8x32xf32>
    %cst_41 = arith.constant 1.000000e+00 : f32
    %139 = vector.broadcast %cst_41 : f32 to vector<8x32xf32>
    %140 = arith.addf %139, %138 : vector<8x32xf32>
    %141 = arith.divf %139, %140 : vector<8x32xf32>
    %142 = arith.mulf %133, %111 : vector<8x32xf32>
    %143 = arith.mulf %127, %135 : vector<8x32xf32>
    %144 = arith.addf %142, %143 : vector<8x32xf32>
    %145 = math.tanh %144 : vector<8x32xf32>
    %146 = arith.mulf %141, %145 : vector<8x32xf32>
    %147 = arith.index_cast %117 : i32 to index
    %c0_42 = arith.constant 0 : index
    %148 = vector.load %arg13[%147, %c0_42] : memref<64x32xf32, #tpu.memory_space<vmem>>, vector<8x32xf32>
    tpu.vector_store %arg13[%147, %c0_42], %146 {strides = array<i32>} : memref<64x32xf32, #tpu.memory_space<vmem>>, vector<8x32xf32>,
    %c4_i32 = arith.constant 4 : i32
    %c8_i32_43 = arith.constant 8 : i32
    %149 = arith.muli %c4_i32, %c8_i32_43 : i32
    %150 = tpu.assume_multiple %149, 8 : i32
    %151 = arith.index_cast %150 : i32 to index
    %c0_44 = arith.constant 0 : index
    %152 = vector.load %arg12[%151, %c0_44] : memref<64x128xf32, #tpu.memory_space<vmem>>, vector<8x128xf32>
    %cst_45 = arith.constant dense<0.000000e+00> : vector<8x128xf32>
    %153 = tpu.matmul %146, %14, %cst_45 {dimension_numbers = #tpu.dot_dimension_numbers<[1], [0], [0], [1], [0, 0, 1, 1], [], []>} : vector<8x32xf32>, vector<32x128xf32>, vector<8x128xf32> -> vector<8x128xf32>
    %154 = arith.addf %152, %153 : vector<8x128xf32>
    %155 = vector.extract_strided_slice %154 {offsets = [0, 0], sizes = [8, 32], strides = [1, 1]} : vector<8x128xf32> to vector<8x32xf32>
    %156 = arith.negf %155 : vector<8x32xf32>
    %157 = math.exp %156 : vector<8x32xf32>
    %cst_46 = arith.constant 1.000000e+00 : f32
    %158 = vector.broadcast %cst_46 : f32 to vector<8x32xf32>
    %159 = arith.addf %158, %157 : vector<8x32xf32>
    %160 = arith.divf %158, %159 : vector<8x32xf32>
    %161 = vector.extract_strided_slice %154 {offsets = [0, 32], sizes = [8, 32], strides = [1, 1]} : vector<8x128xf32> to vector<8x32xf32>
    %162 = arith.negf %161 : vector<8x32xf32>
    %163 = math.exp %162 : vector<8x32xf32>
    %cst_47 = arith.constant 1.000000e+00 : f32
    %164 = vector.broadcast %cst_47 : f32 to vector<8x32xf32>
    %165 = arith.addf %164, %163 : vector<8x32xf32>
    %166 = arith.divf %164, %165 : vector<8x32xf32>
    %167 = vector.extract_strided_slice %154 {offsets = [0, 64], sizes = [8, 32], strides = [1, 1]} : vector<8x128xf32> to vector<8x32xf32>
    %168 = math.tanh %167 : vector<8x32xf32>
    %169 = vector.extract_strided_slice %154 {offsets = [0, 96], sizes = [8, 32], strides = [1, 1]} : vector<8x128xf32> to vector<8x32xf32>
    %170 = arith.negf %169 : vector<8x32xf32>
    %171 = math.exp %170 : vector<8x32xf32>
    %cst_48 = arith.constant 1.000000e+00 : f32
    %172 = vector.broadcast %cst_48 : f32 to vector<8x32xf32>
    %173 = arith.addf %172, %171 : vector<8x32xf32>
    %174 = arith.divf %172, %173 : vector<8x32xf32>
    %175 = arith.mulf %166, %144 : vector<8x32xf32>
    %176 = arith.mulf %160, %168 : vector<8x32xf32>
    %177 = arith.addf %175, %176 : vector<8x32xf32>
    %178 = math.tanh %177 : vector<8x32xf32>
    %179 = arith.mulf %174, %178 : vector<8x32xf32>
    %180 = arith.index_cast %150 : i32 to index
    %c0_49 = arith.constant 0 : index
    %181 = vector.load %arg13[%180, %c0_49] : memref<64x32xf32, #tpu.memory_space<vmem>>, vector<8x32xf32>
    tpu.vector_store %arg13[%180, %c0_49], %179 {strides = array<i32>} : memref<64x32xf32, #tpu.memory_space<vmem>>, vector<8x32xf32>,
    %c5_i32 = arith.constant 5 : i32
    %c8_i32_50 = arith.constant 8 : i32
    %182 = arith.muli %c5_i32, %c8_i32_50 : i32
    %183 = tpu.assume_multiple %182, 8 : i32
    %184 = arith.index_cast %183 : i32 to index
    %c0_51 = arith.constant 0 : index
    %185 = vector.load %arg12[%184, %c0_51] : memref<64x128xf32, #tpu.memory_space<vmem>>, vector<8x128xf32>
    %cst_52 = arith.constant dense<0.000000e+00> : vector<8x128xf32>
    %186 = tpu.matmul %179, %14, %cst_52 {dimension_numbers = #tpu.dot_dimension_numbers<[1], [0], [0], [1], [0, 0, 1, 1], [], []>} : vector<8x32xf32>, vector<32x128xf32>, vector<8x128xf32> -> vector<8x128xf32>
    %187 = arith.addf %185, %186 : vector<8x128xf32>
    %188 = vector.extract_strided_slice %187 {offsets = [0, 0], sizes = [8, 32], strides = [1, 1]} : vector<8x128xf32> to vector<8x32xf32>
    %189 = arith.negf %188 : vector<8x32xf32>
    %190 = math.exp %189 : vector<8x32xf32>
    %cst_53 = arith.constant 1.000000e+00 : f32
    %191 = vector.broadcast %cst_53 : f32 to vector<8x32xf32>
    %192 = arith.addf %191, %190 : vector<8x32xf32>
    %193 = arith.divf %191, %192 : vector<8x32xf32>
    %194 = vector.extract_strided_slice %187 {offsets = [0, 32], sizes = [8, 32], strides = [1, 1]} : vector<8x128xf32> to vector<8x32xf32>
    %195 = arith.negf %194 : vector<8x32xf32>
    %196 = math.exp %195 : vector<8x32xf32>
    %cst_54 = arith.constant 1.000000e+00 : f32
    %197 = vector.broadcast %cst_54 : f32 to vector<8x32xf32>
    %198 = arith.addf %197, %196 : vector<8x32xf32>
    %199 = arith.divf %197, %198 : vector<8x32xf32>
    %200 = vector.extract_strided_slice %187 {offsets = [0, 64], sizes = [8, 32], strides = [1, 1]} : vector<8x128xf32> to vector<8x32xf32>
    %201 = math.tanh %200 : vector<8x32xf32>
    %202 = vector.extract_strided_slice %187 {offsets = [0, 96], sizes = [8, 32], strides = [1, 1]} : vector<8x128xf32> to vector<8x32xf32>
    %203 = arith.negf %202 : vector<8x32xf32>
    %204 = math.exp %203 : vector<8x32xf32>
    %cst_55 = arith.constant 1.000000e+00 : f32
    %205 = vector.broadcast %cst_55 : f32 to vector<8x32xf32>
    %206 = arith.addf %205, %204 : vector<8x32xf32>
    %207 = arith.divf %205, %206 : vector<8x32xf32>
    %208 = arith.mulf %199, %177 : vector<8x32xf32>
    %209 = arith.mulf %193, %201 : vector<8x32xf32>
    %210 = arith.addf %208, %209 : vector<8x32xf32>
    %211 = math.tanh %210 : vector<8x32xf32>
    %212 = arith.mulf %207, %211 : vector<8x32xf32>
    %213 = arith.index_cast %183 : i32 to index
    %c0_56 = arith.constant 0 : index
    %214 = vector.load %arg13[%213, %c0_56] : memref<64x32xf32, #tpu.memory_space<vmem>>, vector<8x32xf32>
    tpu.vector_store %arg13[%213, %c0_56], %212 {strides = array<i32>} : memref<64x32xf32, #tpu.memory_space<vmem>>, vector<8x32xf32>,
    %c6_i32 = arith.constant 6 : i32
    %c8_i32_57 = arith.constant 8 : i32
    %215 = arith.muli %c6_i32, %c8_i32_57 : i32
    %216 = tpu.assume_multiple %215, 8 : i32
    %217 = arith.index_cast %216 : i32 to index
    %c0_58 = arith.constant 0 : index
    %218 = vector.load %arg12[%217, %c0_58] : memref<64x128xf32, #tpu.memory_space<vmem>>, vector<8x128xf32>
    %cst_59 = arith.constant dense<0.000000e+00> : vector<8x128xf32>
    %219 = tpu.matmul %212, %14, %cst_59 {dimension_numbers = #tpu.dot_dimension_numbers<[1], [0], [0], [1], [0, 0, 1, 1], [], []>} : vector<8x32xf32>, vector<32x128xf32>, vector<8x128xf32> -> vector<8x128xf32>
    %220 = arith.addf %218, %219 : vector<8x128xf32>
    %221 = vector.extract_strided_slice %220 {offsets = [0, 0], sizes = [8, 32], strides = [1, 1]} : vector<8x128xf32> to vector<8x32xf32>
    %222 = arith.negf %221 : vector<8x32xf32>
    %223 = math.exp %222 : vector<8x32xf32>
    %cst_60 = arith.constant 1.000000e+00 : f32
    %224 = vector.broadcast %cst_60 : f32 to vector<8x32xf32>
    %225 = arith.addf %224, %223 : vector<8x32xf32>
    %226 = arith.divf %224, %225 : vector<8x32xf32>
    %227 = vector.extract_strided_slice %220 {offsets = [0, 32], sizes = [8, 32], strides = [1, 1]} : vector<8x128xf32> to vector<8x32xf32>
    %228 = arith.negf %227 : vector<8x32xf32>
    %229 = math.exp %228 : vector<8x32xf32>
    %cst_61 = arith.constant 1.000000e+00 : f32
    %230 = vector.broadcast %cst_61 : f32 to vector<8x32xf32>
    %231 = arith.addf %230, %229 : vector<8x32xf32>
    %232 = arith.divf %230, %231 : vector<8x32xf32>
    %233 = vector.extract_strided_slice %220 {offsets = [0, 64], sizes = [8, 32], strides = [1, 1]} : vector<8x128xf32> to vector<8x32xf32>
    %234 = math.tanh %233 : vector<8x32xf32>
    %235 = vector.extract_strided_slice %220 {offsets = [0, 96], sizes = [8, 32], strides = [1, 1]} : vector<8x128xf32> to vector<8x32xf32>
    %236 = arith.negf %235 : vector<8x32xf32>
    %237 = math.exp %236 : vector<8x32xf32>
    %cst_62 = arith.constant 1.000000e+00 : f32
    %238 = vector.broadcast %cst_62 : f32 to vector<8x32xf32>
    %239 = arith.addf %238, %237 : vector<8x32xf32>
    %240 = arith.divf %238, %239 : vector<8x32xf32>
    %241 = arith.mulf %232, %210 : vector<8x32xf32>
    %242 = arith.mulf %226, %234 : vector<8x32xf32>
    %243 = arith.addf %241, %242 : vector<8x32xf32>
    %244 = math.tanh %243 : vector<8x32xf32>
    %245 = arith.mulf %240, %244 : vector<8x32xf32>
    %246 = arith.index_cast %216 : i32 to index
    %c0_63 = arith.constant 0 : index
    %247 = vector.load %arg13[%246, %c0_63] : memref<64x32xf32, #tpu.memory_space<vmem>>, vector<8x32xf32>
    tpu.vector_store %arg13[%246, %c0_63], %245 {strides = array<i32>} : memref<64x32xf32, #tpu.memory_space<vmem>>, vector<8x32xf32>,
    %c7_i32 = arith.constant 7 : i32
    %c8_i32_64 = arith.constant 8 : i32
    %248 = arith.muli %c7_i32, %c8_i32_64 : i32
    %249 = tpu.assume_multiple %248, 8 : i32
    %250 = arith.index_cast %249 : i32 to index
    %c0_65 = arith.constant 0 : index
    %251 = vector.load %arg12[%250, %c0_65] : memref<64x128xf32, #tpu.memory_space<vmem>>, vector<8x128xf32>
    %cst_66 = arith.constant dense<0.000000e+00> : vector<8x128xf32>
    %252 = tpu.matmul %245, %14, %cst_66 {dimension_numbers = #tpu.dot_dimension_numbers<[1], [0], [0], [1], [0, 0, 1, 1], [], []>} : vector<8x32xf32>, vector<32x128xf32>, vector<8x128xf32> -> vector<8x128xf32>
    %253 = arith.addf %251, %252 : vector<8x128xf32>
    %254 = vector.extract_strided_slice %253 {offsets = [0, 0], sizes = [8, 32], strides = [1, 1]} : vector<8x128xf32> to vector<8x32xf32>
    %255 = arith.negf %254 : vector<8x32xf32>
    %256 = math.exp %255 : vector<8x32xf32>
    %cst_67 = arith.constant 1.000000e+00 : f32
    %257 = vector.broadcast %cst_67 : f32 to vector<8x32xf32>
    %258 = arith.addf %257, %256 : vector<8x32xf32>
    %259 = arith.divf %257, %258 : vector<8x32xf32>
    %260 = vector.extract_strided_slice %253 {offsets = [0, 32], sizes = [8, 32], strides = [1, 1]} : vector<8x128xf32> to vector<8x32xf32>
    %261 = arith.negf %260 : vector<8x32xf32>
    %262 = math.exp %261 : vector<8x32xf32>
    %cst_68 = arith.constant 1.000000e+00 : f32
    %263 = vector.broadcast %cst_68 : f32 to vector<8x32xf32>
    %264 = arith.addf %263, %262 : vector<8x32xf32>
    %265 = arith.divf %263, %264 : vector<8x32xf32>
    %266 = vector.extract_strided_slice %253 {offsets = [0, 64], sizes = [8, 32], strides = [1, 1]} : vector<8x128xf32> to vector<8x32xf32>
    %267 = math.tanh %266 : vector<8x32xf32>
    %268 = vector.extract_strided_slice %253 {offsets = [0, 96], sizes = [8, 32], strides = [1, 1]} : vector<8x128xf32> to vector<8x32xf32>
    %269 = arith.negf %268 : vector<8x32xf32>
    %270 = math.exp %269 : vector<8x32xf32>
    %cst_69 = arith.constant 1.000000e+00 : f32
    %271 = vector.broadcast %cst_69 : f32 to vector<8x32xf32>
    %272 = arith.addf %271, %270 : vector<8x32xf32>
    %273 = arith.divf %271, %272 : vector<8x32xf32>
    %274 = arith.mulf %265, %243 : vector<8x32xf32>
    %275 = arith.mulf %259, %267 : vector<8x32xf32>
    %276 = arith.addf %274, %275 : vector<8x32xf32>
    %277 = math.tanh %276 : vector<8x32xf32>
    %278 = arith.mulf %273, %277 : vector<8x32xf32>
    %279 = arith.index_cast %249 : i32 to index
    %c0_70 = arith.constant 0 : index
    %280 = vector.load %arg13[%279, %c0_70] : memref<64x32xf32, #tpu.memory_space<vmem>>, vector<8x32xf32>
    tpu.vector_store %arg13[%279, %c0_70], %278 {strides = array<i32>} : memref<64x32xf32, #tpu.memory_space<vmem>>, vector<8x32xf32>,
    %c8_i32_71 = arith.constant 8 : i32
    %c0_72 = arith.constant 0 : index
    %c0_73 = arith.constant 0 : index
    %281 = vector.load %arg10[%c0_72, %c0_73] : memref<8x32xf32, #tpu.memory_space<vmem>>, vector<8x32xf32>
    tpu.vector_store %arg10[%c0_72, %c0_73], %278 {strides = array<i32>} : memref<8x32xf32, #tpu.memory_space<vmem>>, vector<8x32xf32>,
    %c0_74 = arith.constant 0 : index
    %c0_75 = arith.constant 0 : index
    %282 = vector.load %arg11[%c0_74, %c0_75] : memref<8x32xf32, #tpu.memory_space<vmem>>, vector<8x32xf32>
    tpu.vector_store %arg11[%c0_74, %c0_75], %276 {strides = array<i32>} : memref<8x32xf32, #tpu.memory_space<vmem>>, vector<8x32xf32>,
    %c0_76 = arith.constant 0 : index
    %c0_77 = arith.constant 0 : index
    %283 = vector.load %arg13[%c0_76, %c0_77] : memref<64x32xf32, #tpu.memory_space<vmem>>, vector<64x32xf32>
    %c0_78 = arith.constant 0 : index
    %c0_79 = arith.constant 0 : index
    %284 = vector.load %arg5[%c0_78, %c0_79] : memref<32x128xf32, #tpu.memory_space<vmem>>, vector<32x128xf32>
    %cst_80 = arith.constant dense<0.000000e+00> : vector<64x128xf32>
    %285 = tpu.matmul %283, %284, %cst_80 {dimension_numbers = #tpu.dot_dimension_numbers<[1], [0], [0], [1], [0, 0, 1, 1], [], []>} : vector<64x32xf32>, vector<32x128xf32>, vector<64x128xf32> -> vector<64x128xf32>
    %c0_81 = arith.constant 0 : index
    %c0_82 = arith.constant 0 : index
    %286 = vector.load %arg6[%c0_81, %c0_82] : memref<1x128xf32, #tpu.memory_space<vmem>>, vector<1x128xf32>
    %287 = vector.broadcast %286 : vector<1x128xf32> to vector<64x128xf32>
    %288 = arith.addf %285, %287 : vector<64x128xf32>
    %c0_83 = arith.constant 0 : index
    %c0_84 = arith.constant 0 : index
    %289 = vector.load %arg9[%c0_83, %c0_84] : memref<64x128xf32, #tpu.memory_space<vmem>>, vector<64x128xf32>
    tpu.vector_store %arg9[%c0_83, %c0_84], %288 {strides = array<i32>} : memref<64x128xf32, #tpu.memory_space<vmem>>, vector<64x128xf32>,
    return
  }
}

</mosaic_0001>

<llo_original>
// kernel: char_decoder_forward.1
$region0: #{char_decoder_forward.1}
  #allocation0 [shape = 'u32[]', space=smem, size = 0x4, offset = 0x4, fixed_abs, tag = 'smem constant byte address 0x4 - core index']
  #allocation1 [shape = 'u32[72,128]{1,0:T(1,128)}', space=vmem, size = 0x9000, scoped, tag = 'internal scratch']
  #allocation2 [shape = 'f32[64,128]{1,0:T(8,128)}', space=vmem, size = 0x8000, scoped, tag = 'scratch operand']
  #allocation3 [shape = 'f32[64,32]{1,0:T(8,128)}', space=vmem, size = 0x8000, scoped, tag = 'scratch operand']
  %s0 = inlined_call_operand.vmem [shape: s32[64,1], index: 0, kind: input, shape index: {}]
  %s1 = inlined_call_operand.vmem [shape: f32[128,32], index: 1, kind: input, shape index: {}]
  %s2 = inlined_call_operand.vmem [shape: f32[32,128], index: 2, kind: input, shape index: {}]
  %s3 = inlined_call_operand.vmem [shape: f32[32,128], index: 3, kind: input, shape index: {}]
  %s4 = inlined_call_operand.vmem [shape: f32[1,128], index: 4, kind: input, shape index: {}]
  %s5 = inlined_call_operand.vmem [shape: f32[32,128], index: 5, kind: input, shape index: {}]
  %s6 = inlined_call_operand.vmem [shape: f32[1,128], index: 6, kind: input, shape index: {}]
  %s7 = inlined_call_operand.vmem [shape: f32[8,32], index: 7, kind: input, shape index: {}]
  %s8 = inlined_call_operand.vmem [shape: f32[8,32], index: 8, kind: input, shape index: {}]
  %s9 = inlined_call_operand.vmem [shape: f32[64,128], index: 9, kind: output, shape index: {0}]
  %s10 = inlined_call_operand.vmem [shape: f32[8,32], index: 10, kind: output, shape index: {1}]
  %s11 = inlined_call_operand.vmem [shape: f32[8,32], index: 11, kind: output, shape index: {2}]
  %12 = xla_tuple %s9, %s10, %s11
  %s13 = sld [smem:[#allocation0]]
  $region62: #{char_decoder_forward.1} parent=0
    _
  %s15 = ssub.s32 1, %s13
  %s16 = scalar_select 0, %s15, %s13
  // Predicated region
  $region2: #{char_decoder_forward.1} parent=0 // pred_check
    _
  $region3: #{char_decoder_forward.1} parent=0 // pred_check_branch
    %18 = sbr.rel (0) target = $region5
  $region4: #{char_decoder_forward.1} parent=0 // pred_region
    _
  $region5: #{char_decoder_forward.1} parent=0 // pred_fallthru
    _
  // Predicated region
  $region6: #{char_decoder_forward.1} parent=0 // pred_check
    _
  $region7: #{char_decoder_forward.1} parent=0 // pred_check_branch
    %20 = sbr.rel (0) target = $region9
  $region8: #{char_decoder_forward.1} parent=0 // pred_region
    _
  $region9: #{char_decoder_forward.1} parent=0 // pred_fallthru
    _
  // Predicated region
  $region10: #{char_decoder_forward.1} parent=0 // pred_check
    _
  $region11: #{char_decoder_forward.1} parent=0 // pred_check_branch
    %22 = sbr.rel (0) target = $region13
  $region12: #{char_decoder_forward.1} parent=0 // pred_region
    _
  $region13: #{char_decoder_forward.1} parent=0 // pred_fallthru
    _
  // Predicated region
  $region14: #{char_decoder_forward.1} parent=0 // pred_check
    _
  $region15: #{char_decoder_forward.1} parent=0 // pred_check_branch
    %24 = sbr.rel (0) target = $region17
  $region16: #{char_decoder_forward.1} parent=0 // pred_region
    _
  $region17: #{char_decoder_forward.1} parent=0 // pred_fallthru
    _
  // Predicated region
  $region18: #{char_decoder_forward.1} parent=0 // pred_check
    _
  $region19: #{char_decoder_forward.1} parent=0 // pred_check_branch
    %26 = sbr.rel (0) target = $region21
  $region20: #{char_decoder_forward.1} parent=0 // pred_region
    _
  $region21: #{char_decoder_forward.1} parent=0 // pred_fallthru
    _
  // Predicated region
  $region22: #{char_decoder_forward.1} parent=0 // pred_check
    _
  $region23: #{char_decoder_forward.1} parent=0 // pred_check_branch
    %28 = sbr.rel (0) target = $region25
  $region24: #{char_decoder_forward.1} parent=0 // pred_region
    _
  $region25: #{char_decoder_forward.1} parent=0 // pred_fallthru
    _
  // Predicated region
  $region26: #{char_decoder_forward.1} parent=0 // pred_check
    _
  $region27: #{char_decoder_forward.1} parent=0 // pred_check_branch
    %30 = sbr.rel (0) target = $region29
  $region28: #{char_decoder_forward.1} parent=0 // pred_region
    _
  $region29: #{char_decoder_forward.1} parent=0 // pred_fallthru
    _
  // Predicated region
  $region30: #{char_decoder_forward.1} parent=0 // pred_check
    _
  $region31: #{char_decoder_forward.1} parent=0 // pred_check_branch
    %32 = sbr.rel (0) target = $region33
  $region32: #{char_decoder_forward.1} parent=0 // pred_region
    _
  $region33: #{char_decoder_forward.1} parent=0 // pred_fallthru
    _
  // Predicated region
  $region34: #{char_decoder_forward.1} parent=0 // pred_check
    _
  $region35: #{char_decoder_forward.1} parent=0 // pred_check_branch
    %34 = sbr.rel (0) target = $region37
  $region36: #{char_decoder_forward.1} parent=0 // pred_region
    _
  $region37: #{char_decoder_forward.1} parent=0 // pred_fallthru
    _
  %v35 = vlaneseq
  %v36 = vand.u32 %v35, 127
  %v37 = vld [vmem:[%s0] sm:$0xff]
  %v38 = vld [vmem:[%s0 + $0x8] sm:$0xff]
  %v39 = vld [vmem:[%s0 + $0x10] sm:$0xff]
  %v40 = vld [vmem:[%s0 + $0x18] sm:$0xff]
  %v41 = vld [vmem:[%s0 + $0x20] sm:$0xff]
  %v42 = vld [vmem:[%s0 + $0x28] sm:$0xff]
  %v43 = vld [vmem:[%s0 + $0x30] sm:$0xff]
  %v44 = vld [vmem:[%s0 + $0x38] sm:$0xff]
  %45 = vset.pattern.permute.xlu0 0
  %46 = vperm.xlu0 %45, %v37
  %v47 = vpop.permute.xlu0 %46
  %48 = vset.pattern.permute.xlu0 0
  %49 = vperm.xlu0 %48, %v38
  %v50 = vpop.permute.xlu0 %49
  %51 = vset.pattern.permute.xlu0 0
  %52 = vperm.xlu0 %51, %v39
  %v53 = vpop.permute.xlu0 %52
  %54 = vset.pattern.permute.xlu0 0
  %55 = vperm.xlu0 %54, %v40
  %v56 = vpop.permute.xlu0 %55
  %57 = vset.pattern.permute.xlu0 0
  %58 = vperm.xlu0 %57, %v41
  %v59 = vpop.permute.xlu0 %58
  %60 = vset.pattern.permute.xlu0 0
  %61 = vperm.xlu0 %60, %v42
  %v62 = vpop.permute.xlu0 %61
  %63 = vset.pattern.permute.xlu0 0
  %64 = vperm.xlu0 %63, %v43
  %v65 = vpop.permute.xlu0 %64
  %66 = vset.pattern.permute.xlu0 0
  %67 = vperm.xlu0 %66, %v44
  %v68 = vpop.permute.xlu0 %67
  %vm69 = vcmp.eq.s32.totalorder %v36, %v47
  %vm70 = vcmp.eq.s32.totalorder %v36, %v50
  %vm71 = vcmp.eq.s32.totalorder %v36, %v53
  %vm72 = vcmp.eq.s32.totalorder %v36, %v56
  %vm73 = vcmp.eq.s32.totalorder %v36, %v59
  %vm74 = vcmp.eq.s32.totalorder %v36, %v62
  %vm75 = vcmp.eq.s32.totalorder %v36, %v65
  %vm76 = vcmp.eq.s32.totalorder %v36, %v68
  %v77 = vsel %vm69, 1, 0
  %v78 = vsel %vm70, 1, 0
  %v79 = vsel %vm71, 1, 0
  %v80 = vsel %vm72, 1, 0
  %v81 = vsel %vm73, 1, 0
  %v82 = vsel %vm74, 1, 0
  %v83 = vsel %vm75, 1, 0
  %v84 = vsel %vm76, 1, 0
  %v85 = vcvt.s32.f32 %v77
  %v86 = vcvt.s32.f32 %v78
  %v87 = vcvt.s32.f32 %v79
  %v88 = vcvt.s32.f32 %v80
  %v89 = vcvt.s32.f32 %v81
  %v90 = vcvt.s32.f32 %v82
  %v91 = vcvt.s32.f32 %v83
  %v92 = vcvt.s32.f32 %v84
  %v93 = vld [vmem:[%s1] sm:$0xff]
  %v94 = vld [vmem:[%s1 + $0x8] sm:$0xff]
  %v95 = vld [vmem:[%s1 + $0x10] sm:$0xff]
  %v96 = vld [vmem:[%s1 + $0x18] sm:$0xff]
  %v97 = vld [vmem:[%s1 + $0x20] sm:$0xff]
  %v98 = vld [vmem:[%s1 + $0x28] sm:$0xff]
  %v99 = vld [vmem:[%s1 + $0x30] sm:$0xff]
  %v100 = vld [vmem:[%s1 + $0x38] sm:$0xff]
  %v101 = vld [vmem:[%s1 + $0x40] sm:$0xff]
  %v102 = vld [vmem:[%s1 + $0x48] sm:$0xff]
  %v103 = vld [vmem:[%s1 + $0x50] sm:$0xff]
  %v104 = vld [vmem:[%s1 + $0x58] sm:$0xff]
  %v105 = vld [vmem:[%s1 + $0x60] sm:$0xff]
  %v106 = vld [vmem:[%s1 + $0x68] sm:$0xff]
  %v107 = vld [vmem:[%s1 + $0x70] sm:$0xff]
  %v108 = vld [vmem:[%s1 + $0x78] sm:$0xff]
  %109 = vmatpush.msra.mxu0 %v108
  %110 = vmatpush.msra.mxu0 %v107
  %111 = vmatpush.msra.mxu0 %v106
  %112 = vmatpush.msra.mxu0 %v105
  %113 = vmatpush.msra.mxu0 %v104
  %114 = vmatpush.msra.mxu0 %v103
  %115 = vmatpush.msra.mxu0 %v102
  %116 = vmatpush.msra.mxu0 %v101
  %117 = vmatpush.msra.mxu0 %v100
  %118 = vmatpush.msra.mxu0 %v99
  %119 = vmatpush.msra.mxu0 %v98
  %120 = vmatpush.msra.mxu0 %v97
  %121 = vmatpush.msra.mxu0 %v96
  %122 = vmatpush.msra.mxu0 %v95
  %123 = vmatpush.msra.mxu0 %v94
  %124 = vmatpush.msra.mxu0 %v93
  %125 = vmatmul.f32.gmra.mxu0 %v85
  %v126 = vpop.f32.mrf.mxu0
  %v127 = vadd.f32 0.0, %v126
  %128 = vmatmul.f32.gmra.mxu0 %v86
  %v129 = vpop.f32.mrf.mxu0
  %v130 = vadd.f32 0.0, %v129
  %131 = vmatmul.f32.gmra.mxu0 %v87
  %v132 = vpop.f32.mrf.mxu0
  %v133 = vadd.f32 0.0, %v132
  %134 = vmatmul.f32.gmra.mxu0 %v88
  %v135 = vpop.f32.mrf.mxu0
  %v136 = vadd.f32 0.0, %v135
  %137 = vmatmul.f32.gmra.mxu0 %v89
  %v138 = vpop.f32.mrf.mxu0
  %v139 = vadd.f32 0.0, %v138
  %140 = vmatmul.f32.gmra.mxu0 %v90
  %v141 = vpop.f32.mrf.mxu0
  %v142 = vadd.f32 0.0, %v141
  %143 = vmatmul.f32.gmra.mxu0 %v91
  %v144 = vpop.f32.mrf.mxu0
  %v145 = vadd.f32 0.0, %v144
  %146 = vmatmul.f32.gmra.mxu0 %v92
  %v147 = vpop.f32.mrf.mxu0
  %v148 = vadd.f32 0.0, %v147
  %149 = vdwg.mxu0
  %v150 = vld [vmem:[%s2] sm:$0xff]
  %v151 = vld [vmem:[%s2 + $0x8] sm:$0xff]
  %v152 = vld [vmem:[%s2 + $0x10] sm:$0xff]
  %v153 = vld [vmem:[%s2 + $0x18] sm:$0xff]
  %v154 = vld [vmem:[%s4] sm:$0x1]
  %v156 = vperm.slane %v154, 0
  %vm158 = vcmask 261120
  %v160 = vsel %vm158, %v127, 0
  %v163 = vsel %vm158, %v130, 0
  %v166 = vsel %vm158, %v133, 0
  %v169 = vsel %vm158, %v136, 0
  %v172 = vsel %vm158, %v139, 0
  %v175 = vsel %vm158, %v142, 0
  %v178 = vsel %vm158, %v145, 0
  %v181 = vsel %vm158, %v148, 0
  %183 = vmatpush.msra.mxu0 0.0
  %184 = vmatpush.msra.mxu0 0.0
  %185 = vmatpush.msra.mxu0 0.0
  %186 = vmatpush.msra.mxu0 0.0
  %187 = vmatpush.msra.mxu0 0.0
  %188 = vmatpush.msra.mxu0 0.0
  %189 = vmatpush.msra.mxu0 0.0
  %190 = vmatpush.msra.mxu0 0.0
  %191 = vmatpush.msra.mxu0 0.0
  %192 = vmatpush.msra.mxu0 0.0
  %193 = vmatpush.msra.mxu0 0.0
  %194 = vmatpush.msra.mxu0 0.0
  %195 = vmatpush.msra.mxu0 %v153
  %196 = vmatpush.msra.mxu0 %v152
  %197 = vmatpush.msra.mxu0 %v151
  %198 = vmatpush.msra.mxu0 %v150
  %199 = vmatmul.f32.gmra.mxu0 %v160
  %v200 = vpop.f32.mrf.mxu0
  %v201 = vadd.f32 %v156, %v200
  %202 = vmatmul.f32.gmra.mxu0 %v163
  %v203 = vpop.f32.mrf.mxu0
  %v204 = vadd.f32 %v156, %v203
  %205 = vmatmul.f32.gmra.mxu0 %v166
  %v206 = vpop.f32.mrf.mxu0
  %v207 = vadd.f32 %v156, %v206
  %208 = vmatmul.f32.gmra.mxu0 %v169
  %v209 = vpop.f32.mrf.mxu0
  %v210 = vadd.f32 %v156, %v209
  %211 = vmatmul.f32.gmra.mxu0 %v172
  %v212 = vpop.f32.mrf.mxu0
  %v213 = vadd.f32 %v156, %v212
  %214 = vmatmul.f32.gmra.mxu0 %v175
  %v215 = vpop.f32.mrf.mxu0
  %v216 = vadd.f32 %v156, %v215
  %217 = vmatmul.f32.gmra.mxu0 %v178
  %v218 = vpop.f32.mrf.mxu0
  %v219 = vadd.f32 %v156, %v218
  %220 = vmatmul.f32.gmra.mxu0 %v181
  %v221 = vpop.f32.mrf.mxu0
  %v222 = vadd.f32 %v156, %v221
  %223 = vdwg.mxu0
  %224 = vst [vmem:[#allocation2] sm:$0xff] %v201
  %225 = vst [vmem:[#allocation2 + $0x8] sm:$0xff] %v204
  %226 = vst [vmem:[#allocation2 + $0x10] sm:$0xff] %v207
  %227 = vst [vmem:[#allocation2 + $0x18] sm:$0xff] %v210
  %228 = vst [vmem:[#allocation2 + $0x20] sm:$0xff] %v213
  %229 = vst [vmem:[#allocation2 + $0x28] sm:$0xff] %v216
  %230 = vst [vmem:[#allocation2 + $0x30] sm:$0xff] %v219
  %231 = vst [vmem:[#allocation2 + $0x38] sm:$0xff] %v222
  %v232 = vld [vmem:[%s3] sm:$0xff]
  %v233 = vld [vmem:[%s3 + $0x8] sm:$0xff]
  %v234 = vld [vmem:[%s3 + $0x10] sm:$0xff]
  %v235 = vld [vmem:[%s3 + $0x18] sm:$0xff]
  %v236 = vld [vmem:[%s7] sm:$0xff]
  %v237 = vld [vmem:[%s8] sm:$0xff]
  %v238 = vld [vmem:[#allocation2] sm:$0xff]
  %v240 = vsel %vm158, %v236, 0
  %242 = vmatpush.msra.mxu0 0.0
  %243 = vmatpush.msra.mxu0 0.0
  %244 = vmatpush.msra.mxu0 0.0
  %245 = vmatpush.msra.mxu0 0.0
  %246 = vmatpush.msra.mxu0 0.0
  %247 = vmatpush.msra.mxu0 0.0
  %248 = vmatpush.msra.mxu0 0.0
  %249 = vmatpush.msra.mxu0 0.0
  %250 = vmatpush.msra.mxu0 0.0
  %251 = vmatpush.msra.mxu0 0.0
  %252 = vmatpush.msra.mxu0 0.0
  %253 = vmatpush.msra.mxu0 0.0
  %254 = vmatpush.msra.mxu0 %v235
  %255 = vmatpush.msra.mxu0 %v234
  %256 = vmatpush.msra.mxu0 %v233
  %257 = vmatpush.msra.mxu0 %v232
  %258 = vmatmul.f32.gmra.mxu0 %v240
  %v259 = vpop.f32.mrf.mxu0
  %v260 = vadd.f32 0.0, %v259
  %261 = vdwg.mxu0
  %v262 = vadd.f32 %v238, %v260
  %v263 = vxor.u32 %v262, 2147483648
  %v264 = vmul.f32 %v263, 1.442695
  %v265 = vpow.pop %v264
  %v266 = vadd.f32 %v265, 1.0
  %v267 = vrcp.pop %v266
  %v268 = vmul.f32 %v266, %v267
  %v269 = vsub.f32 1.0, %v268
  %v270 = vmul.f32 %v267, %v269
  %v271 = vadd.f32 %v267, %v270
  %vm272 = vweird.f32 %v266
  %vm273 = vweird.f32 %v267
  %vm274 = vmor %vm272, %vm273
  %v275 = vsel %vm274, %v267, %v271
  %v276 = vand.u32 2147483647, %v266
  %vm277 = vcmp.eq.f32.partialorder %v276, 8.507059e+37
  %v278 = vand.u32 %v266, 2147483648
  %v279 = vor.u32 1.1754944e-38, %v278
  %v280 = vsel %vm277, %v279, %v275
  %v281 = vmul.f32 1.0, %v280
  %v282 = vtanh.pop %v262
  %284 = vrot.lane.b32.xlu0 %v237, 32
  %v285 = vpop.permute.xlu0 %284
  %v287 = vmul.f32 %v281, %v285
  %289 = vrot.lane.b32.xlu0 %v282, 64
  %v290 = vpop.permute.xlu0 %289
  %v292 = vmul.f32 %v281, %v290
  %294 = vrot.lane.b32.xlu0 %v292, 32
  %v295 = vpop.permute.xlu0 %294
  %v297 = vadd.f32 %v287, %v295
  %v298 = vtanh.pop %v297
  %300 = vrot.lane.b32.xlu0 %v298, 64
  %v301 = vpop.permute.xlu0 %300
  %v303 = vmul.f32 %v281, %v301
  %305 = vrot.lane.b32.xlu0 %v303, 32
  %v306 = vpop.permute.xlu0 %305
  %308 = vst.msk [vmem:[#allocation3] sm:$0xff] %vm158, %v306
  %s309 = scalar_lea.vmem [#allocation2], 8
  %v310 = vld [vmem:[%s309] sm:$0xff]
  %v311 = vsel %vm158, %v306, 0
  %313 = vmatpush.msra.mxu0 0.0
  %314 = vmatpush.msra.mxu0 0.0
  %315 = vmatpush.msra.mxu0 0.0
  %316 = vmatpush.msra.mxu0 0.0
  %317 = vmatpush.msra.mxu0 0.0
  %318 = vmatpush.msra.mxu0 0.0
  %319 = vmatpush.msra.mxu0 0.0
  %320 = vmatpush.msra.mxu0 0.0
  %321 = vmatpush.msra.mxu0 0.0
  %322 = vmatpush.msra.mxu0 0.0
  %323 = vmatpush.msra.mxu0 0.0
  %324 = vmatpush.msra.mxu0 0.0
  %325 = vmatpush.msra.mxu0 %v235
  %326 = vmatpush.msra.mxu0 %v234
  %327 = vmatpush.msra.mxu0 %v233
  %328 = vmatpush.msra.mxu0 %v232
  %329 = vmatmul.f32.gmra.mxu0 %v311
  %v330 = vpop.f32.mrf.mxu0
  %v331 = vadd.f32 0.0, %v330
  %332 = vdwg.mxu0
  %v333 = vadd.f32 %v310, %v331
  %v334 = vxor.u32 %v333, 2147483648
  %v335 = vmul.f32 %v334, 1.442695
  %v336 = vpow.pop %v335
  %v337 = vadd.f32 %v336, 1.0
  %v338 = vrcp.pop %v337
  %v339 = vmul.f32 %v337, %v338
  %v340 = vsub.f32 1.0, %v339
  %v341 = vmul.f32 %v338, %v340
  %v342 = vadd.f32 %v338, %v341
  %vm343 = vweird.f32 %v337
  %vm344 = vweird.f32 %v338
  %vm345 = vmor %vm343, %vm344
  %v346 = vsel %vm345, %v338, %v342
  %v347 = vand.u32 2147483647, %v337
  %vm348 = vcmp.eq.f32.partialorder %v347, 8.507059e+37
  %v349 = vand.u32 %v337, 2147483648
  %v350 = vor.u32 1.1754944e-38, %v349
  %v351 = vsel %vm348, %v350, %v346
  %v352 = vmul.f32 1.0, %v351
  %v353 = vtanh.pop %v333
  %v354 = vmul.f32 %v352, %v297
  %356 = vrot.lane.b32.xlu0 %v353, 64
  %v357 = vpop.permute.xlu0 %356
  %v359 = vmul.f32 %v352, %v357
  %361 = vrot.lane.b32.xlu0 %v359, 32
  %v362 = vpop.permute.xlu0 %361
  %v364 = vadd.f32 %v354, %v362
  %v365 = vtanh.pop %v364
  %367 = vrot.lane.b32.xlu0 %v365, 64
  %v368 = vpop.permute.xlu0 %367
  %v370 = vmul.f32 %v352, %v368
  %372 = vrot.lane.b32.xlu0 %v370, 32
  %v373 = vpop.permute.xlu0 %372
  %s375 = scalar_lea.vmem [#allocation3], 8
  %376 = vst.msk [vmem:[%s375] sm:$0xff] %vm158, %v373
  %s377 = scalar_lea.vmem [#allocation2], 16
  %v378 = vld [vmem:[%s377] sm:$0xff]
  %v379 = vsel %vm158, %v373, 0
  %381 = vmatpush.msra.mxu0 0.0
  %382 = vmatpush.msra.mxu0 0.0
  %383 = vmatpush.msra.mxu0 0.0
  %384 = vmatpush.msra.mxu0 0.0
  %385 = vmatpush.msra.mxu0 0.0
  %386 = vmatpush.msra.mxu0 0.0
  %387 = vmatpush.msra.mxu0 0.0
  %388 = vmatpush.msra.mxu0 0.0
  %389 = vmatpush.msra.mxu0 0.0
  %390 = vmatpush.msra.mxu0 0.0
  %391 = vmatpush.msra.mxu0 0.0
  %392 = vmatpush.msra.mxu0 0.0
  %393 = vmatpush.msra.mxu0 %v235
  %394 = vmatpush.msra.mxu0 %v234
  %395 = vmatpush.msra.mxu0 %v233
  %396 = vmatpush.msra.mxu0 %v232
  %397 = vmatmul.f32.gmra.mxu0 %v379
  %v398 = vpop.f32.mrf.mxu0
  %v399 = vadd.f32 0.0, %v398
  %400 = vdwg.mxu0
  %v401 = vadd.f32 %v378, %v399
  %v402 = vxor.u32 %v401, 2147483648
  %v403 = vmul.f32 %v402, 1.442695
  %v404 = vpow.pop %v403
  %v405 = vadd.f32 %v404, 1.0
  %v406 = vrcp.pop %v405
  %v407 = vmul.f32 %v405, %v406
  %v408 = vsub.f32 1.0, %v407
  %v409 = vmul.f32 %v406, %v408
  %v410 = vadd.f32 %v406, %v409
  %vm411 = vweird.f32 %v405
  %vm412 = vweird.f32 %v406
  %vm413 = vmor %vm411, %vm412
  %v414 = vsel %vm413, %v406, %v410
  %v415 = vand.u32 2147483647, %v405
  %vm416 = vcmp.eq.f32.partialorder %v415, 8.507059e+37
  %v417 = vand.u32 %v405, 2147483648
  %v418 = vor.u32 1.1754944e-38, %v417
  %v419 = vsel %vm416, %v418, %v414
  %v420 = vmul.f32 1.0, %v419
  %v421 = vtanh.pop %v401
  %v422 = vmul.f32 %v420, %v364
  %424 = vrot.lane.b32.xlu0 %v421, 64
  %v425 = vpop.permute.xlu0 %424
  %v427 = vmul.f32 %v420, %v425
  %429 = vrot.lane.b32.xlu0 %v427, 32
  %v430 = vpop.permute.xlu0 %429
  %v432 = vadd.f32 %v422, %v430
  %v433 = vtanh.pop %v432
  %435 = vrot.lane.b32.xlu0 %v433, 64
  %v436 = vpop.permute.xlu0 %435
  %v438 = vmul.f32 %v420, %v436
  %440 = vrot.lane.b32.xlu0 %v438, 32
  %v441 = vpop.permute.xlu0 %440
  %s443 = scalar_lea.vmem [#allocation3], 16
  %444 = vst.msk [vmem:[%s443] sm:$0xff] %vm158, %v441
  %s445 = scalar_lea.vmem [#allocation2], 24
  %v446 = vld [vmem:[%s445] sm:$0xff]
  %v447 = vsel %vm158, %v441, 0
  %449 = vmatpush.msra.mxu0 0.0
  %450 = vmatpush.msra.mxu0 0.0
  %451 = vmatpush.msra.mxu0 0.0
  %452 = vmatpush.msra.mxu0 0.0
  %453 = vmatpush.msra.mxu0 0.0
  %454 = vmatpush.msra.mxu0 0.0
  %455 = vmatpush.msra.mxu0 0.0
  %456 = vmatpush.msra.mxu0 0.0
  %457 = vmatpush.msra.mxu0 0.0
  %458 = vmatpush.msra.mxu0 0.0
  %459 = vmatpush.msra.mxu0 0.0
  %460 = vmatpush.msra.mxu0 0.0
  %461 = vmatpush.msra.mxu0 %v235
  %462 = vmatpush.msra.mxu0 %v234
  %463 = vmatpush.msra.mxu0 %v233
  %464 = vmatpush.msra.mxu0 %v232
  %465 = vmatmul.f32.gmra.mxu0 %v447
  %v466 = vpop.f32.mrf.mxu0
  %v467 = vadd.f32 0.0, %v466
  %468 = vdwg.mxu0
  %v469 = vadd.f32 %v446, %v467
  %v470 = vxor.u32 %v469, 2147483648
  %v471 = vmul.f32 %v470, 1.442695
  %v472 = vpow.pop %v471
  %v473 = vadd.f32 %v472, 1.0
  %v474 = vrcp.pop %v473
  %v475 = vmul.f32 %v473, %v474
  %v476 = vsub.f32 1.0, %v475
  %v477 = vmul.f32 %v474, %v476
  %v478 = vadd.f32 %v474, %v477
  %vm479 = vweird.f32 %v473
  %vm480 = vweird.f32 %v474
  %vm481 = vmor %vm479, %vm480
  %v482 = vsel %vm481, %v474, %v478
  %v483 = vand.u32 2147483647, %v473
  %vm484 = vcmp.eq.f32.partialorder %v483, 8.507059e+37
  %v485 = vand.u32 %v473, 2147483648
  %v486 = vor.u32 1.1754944e-38, %v485
  %v487 = vsel %vm484, %v486, %v482
  %v488 = vmul.f32 1.0, %v487
  %v489 = vtanh.pop %v469
  %v490 = vmul.f32 %v488, %v432
  %492 = vrot.lane.b32.xlu0 %v489, 64
  %v493 = vpop.permute.xlu0 %492
  %v495 = vmul.f32 %v488, %v493
  %497 = vrot.lane.b32.xlu0 %v495, 32
  %v498 = vpop.permute.xlu0 %497
  %v500 = vadd.f32 %v490, %v498
  %v501 = vtanh.pop %v500
  %503 = vrot.lane.b32.xlu0 %v501, 64
  %v504 = vpop.permute.xlu0 %503
  %v506 = vmul.f32 %v488, %v504
  %508 = vrot.lane.b32.xlu0 %v506, 32
  %v509 = vpop.permute.xlu0 %508
  %s511 = scalar_lea.vmem [#allocation3], 24
  %512 = vst.msk [vmem:[%s511] sm:$0xff] %vm158, %v509
  %s513 = scalar_lea.vmem [#allocation2], 32
  %v514 = vld [vmem:[%s513] sm:$0xff]
  %v515 = vsel %vm158, %v509, 0
  %517 = vmatpush.msra.mxu0 0.0
  %518 = vmatpush.msra.mxu0 0.0
  %519 = vmatpush.msra.mxu0 0.0
  %520 = vmatpush.msra.mxu0 0.0
  %521 = vmatpush.msra.mxu0 0.0
  %522 = vmatpush.msra.mxu0 0.0
  %523 = vmatpush.msra.mxu0 0.0
  %524 = vmatpush.msra.mxu0 0.0
  %525 = vmatpush.msra.mxu0 0.0
  %526 = vmatpush.msra.mxu0 0.0
  %527 = vmatpush.msra.mxu0 0.0
  %528 = vmatpush.msra.mxu0 0.0
  %529 = vmatpush.msra.mxu0 %v235
  %530 = vmatpush.msra.mxu0 %v234
  %531 = vmatpush.msra.mxu0 %v233
  %532 = vmatpush.msra.mxu0 %v232
  %533 = vmatmul.f32.gmra.mxu0 %v515
  %v534 = vpop.f32.mrf.mxu0
  %v535 = vadd.f32 0.0, %v534
  %536 = vdwg.mxu0
  %v537 = vadd.f32 %v514, %v535
  %v538 = vxor.u32 %v537, 2147483648
  %v539 = vmul.f32 %v538, 1.442695
  %v540 = vpow.pop %v539
  %v541 = vadd.f32 %v540, 1.0
  %v542 = vrcp.pop %v541
  %v543 = vmul.f32 %v541, %v542
  %v544 = vsub.f32 1.0, %v543
  %v545 = vmul.f32 %v542, %v544
  %v546 = vadd.f32 %v542, %v545
  %vm547 = vweird.f32 %v541
  %vm548 = vweird.f32 %v542
  %vm549 = vmor %vm547, %vm548
  %v550 = vsel %vm549, %v542, %v546
  %v551 = vand.u32 2147483647, %v541
  %vm552 = vcmp.eq.f32.partialorder %v551, 8.507059e+37
  %v553 = vand.u32 %v541, 2147483648
  %v554 = vor.u32 1.1754944e-38, %v553
  %v555 = vsel %vm552, %v554, %v550
  %v556 = vmul.f32 1.0, %v555
  %v557 = vtanh.pop %v537
  %v558 = vmul.f32 %v556, %v500
  %560 = vrot.lane.b32.xlu0 %v557, 64
  %v561 = vpop.permute.xlu0 %560
  %v563 = vmul.f32 %v556, %v561
  %565 = vrot.lane.b32.xlu0 %v563, 32
  %v566 = vpop.permute.xlu0 %565
  %v568 = vadd.f32 %v558, %v566
  %v569 = vtanh.pop %v568
  %571 = vrot.lane.b32.xlu0 %v569, 64
  %v572 = vpop.permute.xlu0 %571
  %v574 = vmul.f32 %v556, %v572
  %576 = vrot.lane.b32.xlu0 %v574, 32
  %v577 = vpop.permute.xlu0 %576
  %s579 = scalar_lea.vmem [#allocation3], 32
  %580 = vst.msk [vmem:[%s579] sm:$0xff] %vm158, %v577
  %s581 = scalar_lea.vmem [#allocation2], 40
  %v582 = vld [vmem:[%s581] sm:$0xff]
  %v583 = vsel %vm158, %v577, 0
  %585 = vmatpush.msra.mxu0 0.0
  %586 = vmatpush.msra.mxu0 0.0
  %587 = vmatpush.msra.mxu0 0.0
  %588 = vmatpush.msra.mxu0 0.0
  %589 = vmatpush.msra.mxu0 0.0
  %590 = vmatpush.msra.mxu0 0.0
  %591 = vmatpush.msra.mxu0 0.0
  %592 = vmatpush.msra.mxu0 0.0
  %593 = vmatpush.msra.mxu0 0.0
  %594 = vmatpush.msra.mxu0 0.0
  %595 = vmatpush.msra.mxu0 0.0
  %596 = vmatpush.msra.mxu0 0.0
  %597 = vmatpush.msra.mxu0 %v235
  %598 = vmatpush.msra.mxu0 %v234
  %599 = vmatpush.msra.mxu0 %v233
  %600 = vmatpush.msra.mxu0 %v232
  %601 = vmatmul.f32.gmra.mxu0 %v583
  %v602 = vpop.f32.mrf.mxu0
  %v603 = vadd.f32 0.0, %v602
  %604 = vdwg.mxu0
  %v605 = vadd.f32 %v582, %v603
  %v606 = vxor.u32 %v605, 2147483648
  %v607 = vmul.f32 %v606, 1.442695
  %v608 = vpow.pop %v607
  %v609 = vadd.f32 %v608, 1.0
  %v610 = vrcp.pop %v609
  %v611 = vmul.f32 %v609, %v610
  %v612 = vsub.f32 1.0, %v611
  %v613 = vmul.f32 %v610, %v612
  %v614 = vadd.f32 %v610, %v613
  %vm615 = vweird.f32 %v609
  %vm616 = vweird.f32 %v610
  %vm617 = vmor %vm615, %vm616
  %v618 = vsel %vm617, %v610, %v614
  %v619 = vand.u32 2147483647, %v609
  %vm620 = vcmp.eq.f32.partialorder %v619, 8.507059e+37
  %v621 = vand.u32 %v609, 2147483648
  %v622 = vor.u32 1.1754944e-38, %v621
  %v623 = vsel %vm620, %v622, %v618
  %v624 = vmul.f32 1.0, %v623
  %v625 = vtanh.pop %v605
  %v626 = vmul.f32 %v624, %v568
  %628 = vrot.lane.b32.xlu0 %v625, 64
  %v629 = vpop.permute.xlu0 %628
  %v631 = vmul.f32 %v624, %v629
  %633 = vrot.lane.b32.xlu0 %v631, 32
  %v634 = vpop.permute.xlu0 %633
  %v636 = vadd.f32 %v626, %v634
  %v637 = vtanh.pop %v636
  %639 = vrot.lane.b32.xlu0 %v637, 64
  %v640 = vpop.permute.xlu0 %639
  %v642 = vmul.f32 %v624, %v640
  %644 = vrot.lane.b32.xlu0 %v642, 32
  %v645 = vpop.permute.xlu0 %644
  %s647 = scalar_lea.vmem [#allocation3], 40
  %648 = vst.msk [vmem:[%s647] sm:$0xff] %vm158, %v645
  %s649 = scalar_lea.vmem [#allocation2], 48
  %v650 = vld [vmem:[%s649] sm:$0xff]
  %v651 = vsel %vm158, %v645, 0
  %653 = vmatpush.msra.mxu0 0.0
  %654 = vmatpush.msra.mxu0 0.0
  %655 = vmatpush.msra.mxu0 0.0
  %656 = vmatpush.msra.mxu0 0.0
  %657 = vmatpush.msra.mxu0 0.0
  %658 = vmatpush.msra.mxu0 0.0
  %659 = vmatpush.msra.mxu0 0.0
  %660 = vmatpush.msra.mxu0 0.0
  %661 = vmatpush.msra.mxu0 0.0
  %662 = vmatpush.msra.mxu0 0.0
  %663 = vmatpush.msra.mxu0 0.0
  %664 = vmatpush.msra.mxu0 0.0
  %665 = vmatpush.msra.mxu0 %v235
  %666 = vmatpush.msra.mxu0 %v234
  %667 = vmatpush.msra.mxu0 %v233
  %668 = vmatpush.msra.mxu0 %v232
  %669 = vmatmul.f32.gmra.mxu0 %v651
  %v670 = vpop.f32.mrf.mxu0
  %v671 = vadd.f32 0.0, %v670
  %672 = vdwg.mxu0
  %v673 = vadd.f32 %v650, %v671
  %v674 = vxor.u32 %v673, 2147483648
  %v675 = vmul.f32 %v674, 1.442695
  %v676 = vpow.pop %v675
  %v677 = vadd.f32 %v676, 1.0
  %v678 = vrcp.pop %v677
  %v679 = vmul.f32 %v677, %v678
  %v680 = vsub.f32 1.0, %v679
  %v681 = vmul.f32 %v678, %v680
  %v682 = vadd.f32 %v678, %v681
  %vm683 = vweird.f32 %v677
  %vm684 = vweird.f32 %v678
  %vm685 = vmor %vm683, %vm684
  %v686 = vsel %vm685, %v678, %v682
  %v687 = vand.u32 2147483647, %v677
  %vm688 = vcmp.eq.f32.partialorder %v687, 8.507059e+37
  %v689 = vand.u32 %v677, 2147483648
  %v690 = vor.u32 1.1754944e-38, %v689
  %v691 = vsel %vm688, %v690, %v686
  %v692 = vmul.f32 1.0, %v691
  %v693 = vtanh.pop %v673
  %v694 = vmul.f32 %v692, %v636
  %696 = vrot.lane.b32.xlu0 %v693, 64
  %v697 = vpop.permute.xlu0 %696
  %v699 = vmul.f32 %v692, %v697
  %701 = vrot.lane.b32.xlu0 %v699, 32
  %v702 = vpop.permute.xlu0 %701
  %v704 = vadd.f32 %v694, %v702
  %v705 = vtanh.pop %v704
  %707 = vrot.lane.b32.xlu0 %v705, 64
  %v708 = vpop.permute.xlu0 %707
  %v710 = vmul.f32 %v692, %v708
  %712 = vrot.lane.b32.xlu0 %v710, 32
  %v713 = vpop.permute.xlu0 %712
  %s715 = scalar_lea.vmem [#allocation3], 48
  %716 = vst.msk [vmem:[%s715] sm:$0xff] %vm158, %v713
  %s717 = scalar_lea.vmem [#allocation2], 56
  %v718 = vld [vmem:[%s717] sm:$0xff]
  %v719 = vsel %vm158, %v713, 0
  %721 = vmatpush.msra.mxu0 0.0
  %722 = vmatpush.msra.mxu0 0.0
  %723 = vmatpush.msra.mxu0 0.0
  %724 = vmatpush.msra.mxu0 0.0
  %725 = vmatpush.msra.mxu0 0.0
  %726 = vmatpush.msra.mxu0 0.0
  %727 = vmatpush.msra.mxu0 0.0
  %728 = vmatpush.msra.mxu0 0.0
  %729 = vmatpush.msra.mxu0 0.0
  %730 = vmatpush.msra.mxu0 0.0
  %731 = vmatpush.msra.mxu0 0.0
  %732 = vmatpush.msra.mxu0 0.0
  %733 = vmatpush.msra.mxu0 %v235
  %734 = vmatpush.msra.mxu0 %v234
  %735 = vmatpush.msra.mxu0 %v233
  %736 = vmatpush.msra.mxu0 %v232
  %737 = vmatmul.f32.gmra.mxu0 %v719
  %v738 = vpop.f32.mrf.mxu0
  %v739 = vadd.f32 0.0, %v738
  %740 = vdwg.mxu0
  %v741 = vadd.f32 %v718, %v739
  %v742 = vxor.u32 %v741, 2147483648
  %v743 = vmul.f32 %v742, 1.442695
  %v744 = vpow.pop %v743
  %v745 = vadd.f32 %v744, 1.0
  %v746 = vrcp.pop %v745
  %v747 = vmul.f32 %v745, %v746
  %v748 = vsub.f32 1.0, %v747
  %v749 = vmul.f32 %v746, %v748
  %v750 = vadd.f32 %v746, %v749
  %vm751 = vweird.f32 %v745
  %vm752 = vweird.f32 %v746
  %vm753 = vmor %vm751, %vm752
  %v754 = vsel %vm753, %v746, %v750
  %v755 = vand.u32 2147483647, %v745
  %vm756 = vcmp.eq.f32.partialorder %v755, 8.507059e+37
  %v757 = vand.u32 %v745, 2147483648
  %v758 = vor.u32 1.1754944e-38, %v757
  %v759 = vsel %vm756, %v758, %v754
  %v760 = vmul.f32 1.0, %v759
  %v761 = vtanh.pop %v741
  %v762 = vmul.f32 %v760, %v704
  %764 = vrot.lane.b32.xlu0 %v761, 64
  %v765 = vpop.permute.xlu0 %764
  %v767 = vmul.f32 %v760, %v765
  %769 = vrot.lane.b32.xlu0 %v767, 32
  %v770 = vpop.permute.xlu0 %769
  %v772 = vadd.f32 %v762, %v770
  %v773 = vtanh.pop %v772
  %775 = vrot.lane.b32.xlu0 %v773, 64
  %v776 = vpop.permute.xlu0 %775
  %v778 = vmul.f32 %v760, %v776
  %780 = vrot.lane.b32.xlu0 %v778, 32
  %v781 = vpop.permute.xlu0 %780
  %s783 = scalar_lea.vmem [#allocation3], 56
  %784 = vst.msk [vmem:[%s783] sm:$0xff] %vm158, %v781
  %785 = vst.msk [vmem:[%s10] sm:$0xff] %vm158, %v781
  %787 = vrot.lane.b32.xlu0 %v772, 96
  %v788 = vpop.permute.xlu0 %787
  %790 = vst.msk [vmem:[%s11] sm:$0xff] %vm158, %v788
  %v791 = vld [vmem:[#allocation3] sm:$0xff]
  %v792 = vld [vmem:[#allocation3 + $0x8] sm:$0xff]
  %v793 = vld [vmem:[#allocation3 + $0x10] sm:$0xff]
  %v794 = vld [vmem:[#allocation3 + $0x18] sm:$0xff]
  %v795 = vld [vmem:[#allocation3 + $0x20] sm:$0xff]
  %v796 = vld [vmem:[#allocation3 + $0x28] sm:$0xff]
  %v797 = vld [vmem:[#allocation3 + $0x30] sm:$0xff]
  %v798 = vld [vmem:[#allocation3 + $0x38] sm:$0xff]
  %v799 = vld [vmem:[%s5] sm:$0xff]
  %v800 = vld [vmem:[%s5 + $0x8] sm:$0xff]
  %v801 = vld [vmem:[%s5 + $0x10] sm:$0xff]
  %v802 = vld [vmem:[%s5 + $0x18] sm:$0xff]
  %v803 = vld [vmem:[%s6] sm:$0x1]
  %v805 = vperm.slane %v803, 0
  %v808 = vsel %vm158, %v791, 0
  %v811 = vsel %vm158, %v792, 0
  %v814 = vsel %vm158, %v793, 0
  %v817 = vsel %vm158, %v794, 0
  %v820 = vsel %vm158, %v795, 0
  %v823 = vsel %vm158, %v796, 0
  %v826 = vsel %vm158, %v797, 0
  %v829 = vsel %vm158, %v798, 0
  %831 = vmatpush.msra.mxu0 0.0
  %832 = vmatpush.msra.mxu0 0.0
  %833 = vmatpush.msra.mxu0 0.0
  %834 = vmatpush.msra.mxu0 0.0
  %835 = vmatpush.msra.mxu0 0.0
  %836 = vmatpush.msra.mxu0 0.0
  %837 = vmatpush.msra.mxu0 0.0
  %838 = vmatpush.msra.mxu0 0.0
  %839 = vmatpush.msra.mxu0 0.0
  %840 = vmatpush.msra.mxu0 0.0
  %841 = vmatpush.msra.mxu0 0.0
  %842 = vmatpush.msra.mxu0 0.0
  %843 = vmatpush.msra.mxu0 %v802
  %844 = vmatpush.msra.mxu0 %v801
  %845 = vmatpush.msra.mxu0 %v800
  %846 = vmatpush.msra.mxu0 %v799
  %847 = vmatmul.f32.gmra.mxu0 %v808
  %v848 = vpop.f32.mrf.mxu0
  %v849 = vadd.f32 %v805, %v848
  %850 = vmatmul.f32.gmra.mxu0 %v811
  %v851 = vpop.f32.mrf.mxu0
  %v852 = vadd.f32 %v805, %v851
  %853 = vmatmul.f32.gmra.mxu0 %v814
  %v854 = vpop.f32.mrf.mxu0
  %v855 = vadd.f32 %v805, %v854
  %856 = vmatmul.f32.gmra.mxu0 %v817
  %v857 = vpop.f32.mrf.mxu0
  %v858 = vadd.f32 %v805, %v857
  %859 = vmatmul.f32.gmra.mxu0 %v820
  %v860 = vpop.f32.mrf.mxu0
  %v861 = vadd.f32 %v805, %v860
  %862 = vmatmul.f32.gmra.mxu0 %v823
  %v863 = vpop.f32.mrf.mxu0
  %v864 = vadd.f32 %v805, %v863
  %865 = vmatmul.f32.gmra.mxu0 %v826
  %v866 = vpop.f32.mrf.mxu0
  %v867 = vadd.f32 %v805, %v866
  %868 = vmatmul.f32.gmra.mxu0 %v829
  %v869 = vpop.f32.mrf.mxu0
  %v870 = vadd.f32 %v805, %v869
  %871 = vdwg.mxu0
  %872 = vst [vmem:[%s9] sm:$0xff] %v849
  %873 = vst [vmem:[%s9 + $0x8] sm:$0xff] %v852
  %874 = vst [vmem:[%s9 + $0x10] sm:$0xff] %v855
  %875 = vst [vmem:[%s9 + $0x18] sm:$0xff] %v858
  %876 = vst [vmem:[%s9 + $0x20] sm:$0xff] %v861
  %877 = vst [vmem:[%s9 + $0x28] sm:$0xff] %v864
  %878 = vst [vmem:[%s9 + $0x30] sm:$0xff] %v867
  %879 = vst [vmem:[%s9 + $0x38] sm:$0xff] %v870
  // Predicated region
  $region38: #{char_decoder_forward.1} parent=0 // pred_check
    _
  $region39: #{char_decoder_forward.1} parent=0 // pred_check_branch
    %881 = sbr.rel (0) target = $region41
  $region40: #{char_decoder_forward.1} parent=0 // pred_region
    _
  $region41: #{char_decoder_forward.1} parent=0 // pred_fallthru
    _
  // Predicated region
  $region42: #{char_decoder_forward.1} parent=0 // pred_check
    _
  $region43: #{char_decoder_forward.1} parent=0 // pred_check_branch
    %883 = sbr.rel (0) target = $region45
  $region44: #{char_decoder_forward.1} parent=0 // pred_region
    _
  $region45: #{char_decoder_forward.1} parent=0 // pred_fallthru
    _
  // Predicated region
  $region46: #{char_decoder_forward.1} parent=0 // pred_check
    _
  $region47: #{char_decoder_forward.1} parent=0 // pred_check_branch
    %885 = sbr.rel (0) target = $region49
  $region48: #{char_decoder_forward.1} parent=0 // pred_region
    _
  $region49: #{char_decoder_forward.1} parent=0 // pred_fallthru
    _
  // Predicated region
  $region50: #{char_decoder_forward.1} parent=0 // pred_check
    _
  $region51: #{char_decoder_forward.1} parent=0 // pred_check_branch
    %887 = sbr.rel (0) target = $region53
  $region52: #{char_decoder_forward.1} parent=0 // pred_region
    _
  $region53: #{char_decoder_forward.1} parent=0 // pred_fallthru
    _
  // Predicated region
  $region54: #{char_decoder_forward.1} parent=0 // pred_check
    _
  $region55: #{char_decoder_forward.1} parent=0 // pred_check_branch
    %889 = sbr.rel (0) target = $region57
  $region56: #{char_decoder_forward.1} parent=0 // pred_region
    _
  $region57: #{char_decoder_forward.1} parent=0 // pred_fallthru
    _
  // Predicated region
  $region58: #{char_decoder_forward.1} parent=0 // pred_check
    _
  $region59: #{char_decoder_forward.1} parent=0 // pred_check_branch
    %891 = sbr.rel (0) target = $region61
  $region60: #{char_decoder_forward.1} parent=0 // pred_region
    _
  $region61: #{char_decoder_forward.1} parent=0 // pred_fallthru
    _

</llo_original>
